<compile_context>
chip_gen: v6e
topology: v6e:2x2x1
jax: 0.10.0
libtpu: 0.0.40
codegen_flags: <defaults>
</compile_context>

<pallas_src>
import jax
import jax.numpy as jnp
from jax.experimental import pallas as pl
from jax.experimental.pallas import tpu as pltpu


def mlp_kernel(x_ref, w1_ref, b1_ref, w2_ref, b2_ref, w3_ref, b3_ref, o_ref):
    x = x_ref[...]                                   # (TB, F), natural layout

    # Layer 1: (10, F) . (TB, F)^T -> (10, TB). f32 accumulation on the MXU;
    # contracting x on its last dim keeps x in natural layout while producing
    # lane-dense (batch-on-lanes) intermediates.
    h1 = jax.lax.dot_general(
        w1_ref[...], x,
        dimension_numbers=(((1,), (1,)), ((), ())),
        preferred_element_type=jnp.float32) + b1_ref[...]
    h1 = jnp.maximum(h1, 0.01 * h1)                  # LeakyReLU(0.01)

    # Layer 2: (10, 10) . (10, TB) -> (10, TB)
    h2 = jnp.dot(w2_ref[...], h1, preferred_element_type=jnp.float32) + b2_ref[...]
    h2 = jnp.maximum(h2, 0.01 * h2)

    # Layer 3: (2, 10) . (10, TB) -> (2, TB); lane-dense output, full-lane stores.
    o_ref[...] = (jnp.dot(w3_ref[...], h2, preferred_element_type=jnp.float32)
                  + b3_ref[...]).astype(o_ref.dtype)


def _round_up(x, m):
    return ((x + m - 1) // m) * m


def membership_model_forward(x, params, *, tb_max=4096, vmem_limit_bytes=None):
    """x: (B, F). params: PyTorch-layout weights w* (out, in) and biases b* (out, 1).

    Returns (B, 2) to match the module; the kernel itself produces the lane-dense
    (2, B) layout (consumers that can take it directly should skip the final .T).
    """
    B, F = x.shape
    H = params["w2"].shape[0]
    O = params["w3"].shape[0]

    # Batch tile (lane axis of the transposed intermediates / output):
    #  - single tile for small batches (block == full array dims is always legal),
    #  - otherwise 128-lane aligned with >= 2 grid steps so the "parallel" grid
    #    axis can shard across both v7x TensorCores (no-op on v5e/v6e).
    if B > 1024:
        TB = min(tb_max, _round_up(pl.cdiv(B, 2), 128))
    else:
        TB = B
    grid = (pl.cdiv(B, TB),)

    # Layer-1 weight matches x's storage dtype so the MXU sees homogeneous operands
    # (bf16 x => bf16 weights, f32 accumulate). Everything else stays f32 (tiny).
    w1 = params["w1"].astype(x.dtype)                 # (10, F)
    w2, w3 = params["w2"], params["w3"]               # (10, 10), (2, 10)
    b1, b2, b3 = params["b1"], params["b2"], params["b3"]  # (out, 1)

    def const_spec(arr):
        return pl.BlockSpec(arr.shape, lambda i: (0, 0))

    itemsize = jnp.dtype(x.dtype).itemsize
    cost = pl.CostEstimate(
        flops=2 * B * (F * H + H * H + H * O),
        transcendentals=0,
        bytes_accessed=(B * F * itemsize + B * O * 4
                        + int(w1.size) * itemsize
                        + sum(int(a.size) * 4 for a in (w2, w3, b1, b2, b3))),
    )

    out_t = pl.pallas_call(
        mlp_kernel,
        out_shape=jax.ShapeDtypeStruct((O, B), jnp.float32),
        grid=grid,
        in_specs=[
            pl.BlockSpec((TB, F), lambda i: (i, 0)),   # x: batch-tiled, pipelined
            const_spec(w1), const_spec(b1),
            const_spec(w2), const_spec(b2),
            const_spec(w3), const_spec(b3),
        ],
        out_specs=pl.BlockSpec((O, TB), lambda i: (0, i)),  # lane-dense output
        compiler_params=pltpu.CompilerParams(
            dimension_semantics=("parallel",),
            vmem_limit_bytes=vmem_limit_bytes),
        cost_estimate=cost,
    )(x, w1, b1, w2, b2, w3, b3)

    # (2, B) -> (B, 2): negligible XLA op on the tiny output; keeps module semantics.
    return out_t.T


def init_params(key, in_features, hidden=10, out_features=2):
    """Deterministic init mirroring nn.Linear's U(-1/sqrt(fan_in), 1/sqrt(fan_in)).
    Weights stored in PyTorch (out, in) layout; biases as (out, 1)."""
    def linear_init(k, fan_in, fan_out):
        kw, kb = jax.random.split(k)
        bound = 1.0 / jnp.sqrt(jnp.float32(fan_in))
        w = jax.random.uniform(kw, (fan_out, fan_in), jnp.float32, -bound, bound)
        b = jax.random.uniform(kb, (fan_out, 1), jnp.float32, -bound, bound)
        return w, b

    k1, k2, k3 = jax.random.split(key, 3)
    w1, b1 = linear_init(k1, in_features, hidden)
    w2, b2 = linear_init(k2, hidden, hidden)
    w3, b3 = linear_init(k3, hidden, out_features)
    return {"w1": w1, "b1": b1, "w2": w2, "b2": b2, "w3": w3, "b3": b3}


def reference_forward(x, p):
    def lrelu(v):
        return jnp.where(v >= 0, v, 0.01 * v)
    h1 = lrelu(x @ p["w1"].T + p["b1"].T)
    h2 = lrelu(h1 @ p["w2"].T + p["b2"].T)
    return h2 @ p["w3"].T + p["b3"].T


if __name__ == "__main__":
    key = jax.random.PRNGKey(0)
    kx, kp, kx2 = jax.random.split(key, 3)

    B, F = 8, 32  # LazyLinear infers in_features = 32 from the first input
    x = jax.random.normal(kx, (B, F), dtype=jnp.float32)
    params = init_params(kp, in_features=F)

    # --- single-tile path --------------------------------------------------
    out = jax.block_until_ready(membership_model_forward(x, params))
    ref = reference_forward(x, params)
    assert out.shape == (B, 2), out.shape
    assert jnp.allclose(out, ref, atol=1e-4, rtol=1e-4), "single-tile mismatch"

    # --- multi-tile path: >= 2 grid steps, partial last block ---------------
    B2 = 2500
    x2 = jax.random.normal(kx2, (B2, F), dtype=jnp.float32)
    out2 = jax.block_until_ready(membership_model_forward(x2, params, tb_max=1280))
    ref2 = reference_forward(x2, params)
    assert out2.shape == (B2, 2), out2.shape
    assert jnp.allclose(out2, ref2, atol=1e-4, rtol=1e-4), "tiled mismatch"

    print("KERNEL_OK")
</pallas_src>

<mosaic_0001>
module attributes {stable_mosaic.version = 11 : i64} {
  func.func @mlp_kernel(%arg0: i32, %arg1: memref<8x32xf32, #tpu.memory_space<vmem>>, %arg2: memref<10x32xf32, #tpu.memory_space<vmem>>, %arg3: memref<10x1xf32, #tpu.memory_space<vmem>>, %arg4: memref<10x10xf32, #tpu.memory_space<vmem>>, %arg5: memref<10x1xf32, #tpu.memory_space<vmem>>, %arg6: memref<2x10xf32, #tpu.memory_space<vmem>>, %arg7: memref<2x1xf32, #tpu.memory_space<vmem>>, %arg8: memref<2x8xf32, #tpu.memory_space<vmem>>) attributes {dimension_semantics = [#tpu.dimension_semantics<parallel>], iteration_bounds = array<i64: 1>, scalar_prefetch = 0 : i64, scratch_operands = 0 : i64, tpu.core_type = #tpu.core_type<tc>, window_params = [{transform_indices = @transform_0, window_bounds = array<i64: 8, 32>}, {pipeline_mode = #tpu.pipeline_mode<synchronous>, transform_indices = @transform_1, window_bounds = array<i64: 10, 32>}, {pipeline_mode = #tpu.pipeline_mode<synchronous>, transform_indices = @transform_2, window_bounds = array<i64: 10, 1>}, {pipeline_mode = #tpu.pipeline_mode<synchronous>, transform_indices = @transform_3, window_bounds = array<i64: 10, 10>}, {pipeline_mode = #tpu.pipeline_mode<synchronous>, transform_indices = @transform_4, window_bounds = array<i64: 10, 1>}, {pipeline_mode = #tpu.pipeline_mode<synchronous>, transform_indices = @transform_5, window_bounds = array<i64: 2, 10>}, {pipeline_mode = #tpu.pipeline_mode<synchronous>, transform_indices = @transform_6, window_bounds = array<i64: 2, 1>}, {transform_indices = @transform_7, window_bounds = array<i64: 2, 8>}]} {
    %c0 = arith.constant 0 : index
    %c0_0 = arith.constant 0 : index
    %0 = vector.load %arg1[%c0, %c0_0] : memref<8x32xf32, #tpu.memory_space<vmem>>, vector<8x32xf32>
    %c0_1 = arith.constant 0 : index
    %c0_2 = arith.constant 0 : index
    %1 = vector.load %arg2[%c0_1, %c0_2] : memref<10x32xf32, #tpu.memory_space<vmem>>, vector<10x32xf32>
    %cst = arith.constant dense<0.000000e+00> : vector<10x8xf32>
    %2 = tpu.matmul %1, %0, %cst {dimension_numbers = #tpu.dot_dimension_numbers<[1], [1], [0], [0], [0, 0, 1, 0], [], []>} : vector<10x32xf32>, vector<8x32xf32>, vector<10x8xf32> -> vector<10x8xf32>
    %c0_3 = arith.constant 0 : index
    %c0_4 = arith.constant 0 : index
    %3 = vector.load %arg3[%c0_3, %c0_4] : memref<10x1xf32, #tpu.memory_space<vmem>>, vector<10x1xf32>
    %4 = vector.broadcast %3 : vector<10x1xf32> to vector<10x8xf32>
    %5 = arith.addf %2, %4 : vector<10x8xf32>
    %cst_5 = arith.constant 0.00999999977 : f32
    %6 = vector.broadcast %cst_5 : f32 to vector<10x8xf32>
    %7 = arith.mulf %6, %5 : vector<10x8xf32>
    %8 = arith.maximumf %5, %7 : vector<10x8xf32>
    %c0_6 = arith.constant 0 : index
    %c0_7 = arith.constant 0 : index
    %9 = vector.load %arg4[%c0_6, %c0_7] : memref<10x10xf32, #tpu.memory_space<vmem>>, vector<10x10xf32>
    %cst_8 = arith.constant dense<0.000000e+00> : vector<10x8xf32>
    %10 = tpu.matmul %9, %8, %cst_8 {dimension_numbers = #tpu.dot_dimension_numbers<[1], [0], [0], [1], [0, 0, 1, 1], [], []>} : vector<10x10xf32>, vector<10x8xf32>, vector<10x8xf32> -> vector<10x8xf32>
    %c0_9 = arith.constant 0 : index
    %c0_10 = arith.constant 0 : index
    %11 = vector.load %arg5[%c0_9, %c0_10] : memref<10x1xf32, #tpu.memory_space<vmem>>, vector<10x1xf32>
    %12 = vector.broadcast %11 : vector<10x1xf32> to vector<10x8xf32>
    %13 = arith.addf %10, %12 : vector<10x8xf32>
    %cst_11 = arith.constant 0.00999999977 : f32
    %14 = vector.broadcast %cst_11 : f32 to vector<10x8xf32>
    %15 = arith.mulf %14, %13 : vector<10x8xf32>
    %16 = arith.maximumf %13, %15 : vector<10x8xf32>
    %c0_12 = arith.constant 0 : index
    %c0_13 = arith.constant 0 : index
    %17 = vector.load %arg6[%c0_12, %c0_13] : memref<2x10xf32, #tpu.memory_space<vmem>>, vector<2x10xf32>
    %cst_14 = arith.constant dense<0.000000e+00> : vector<2x8xf32>
    %18 = tpu.matmul %17, %16, %cst_14 {dimension_numbers = #tpu.dot_dimension_numbers<[1], [0], [0], [1], [0, 0, 1, 1], [], []>} : vector<2x10xf32>, vector<10x8xf32>, vector<2x8xf32> -> vector<2x8xf32>
    %c0_15 = arith.constant 0 : index
    %c0_16 = arith.constant 0 : index
    %19 = vector.load %arg7[%c0_15, %c0_16] : memref<2x1xf32, #tpu.memory_space<vmem>>, vector<2x1xf32>
    %20 = vector.broadcast %19 : vector<2x1xf32> to vector<2x8xf32>
    %21 = arith.addf %18, %20 : vector<2x8xf32>
    %c0_17 = arith.constant 0 : index
    %c0_18 = arith.constant 0 : index
    %22 = vector.load %arg8[%c0_17, %c0_18] : memref<2x8xf32, #tpu.memory_space<vmem>>, vector<2x8xf32>
    tpu.vector_store %arg8[%c0_17, %c0_18], %21 {strides = array<i32>} : memref<2x8xf32, #tpu.memory_space<vmem>>, vector<2x8xf32>,
    return
  }
  func.func @transform_0(%arg0: i32) -> (i32, i32) {
    %c0_i32 = arith.constant 0 : i32
    %c0_i32_0 = arith.constant 0 : i32
    return %arg0, %c0_i32 : i32, i32
  }
  func.func @transform_1(%arg0: i32) -> (i32, i32) {
    %c0_i32 = arith.constant 0 : i32
    %c0_i32_0 = arith.constant 0 : i32
    %c0_i32_1 = arith.constant 0 : i32
    return %c0_i32, %c0_i32_0 : i32, i32
  }
  func.func @transform_2(%arg0: i32) -> (i32, i32) {
    %c0_i32 = arith.constant 0 : i32
    %c0_i32_0 = arith.constant 0 : i32
    %c0_i32_1 = arith.constant 0 : i32
    return %c0_i32, %c0_i32_0 : i32, i32
  }
  func.func @transform_3(%arg0: i32) -> (i32, i32) {
    %c0_i32 = arith.constant 0 : i32
    %c0_i32_0 = arith.constant 0 : i32
    %c0_i32_1 = arith.constant 0 : i32
    return %c0_i32, %c0_i32_0 : i32, i32
  }
  func.func @transform_4(%arg0: i32) -> (i32, i32) {
    %c0_i32 = arith.constant 0 : i32
    %c0_i32_0 = arith.constant 0 : i32
    %c0_i32_1 = arith.constant 0 : i32
    return %c0_i32, %c0_i32_0 : i32, i32
  }
  func.func @transform_5(%arg0: i32) -> (i32, i32) {
    %c0_i32 = arith.constant 0 : i32
    %c0_i32_0 = arith.constant 0 : i32
    %c0_i32_1 = arith.constant 0 : i32
    return %c0_i32, %c0_i32_0 : i32, i32
  }
  func.func @transform_6(%arg0: i32) -> (i32, i32) {
    %c0_i32 = arith.constant 0 : i32
    %c0_i32_0 = arith.constant 0 : i32
    %c0_i32_1 = arith.constant 0 : i32
    return %c0_i32, %c0_i32_0 : i32, i32
  }
  func.func @transform_7(%arg0: i32) -> (i32, i32) {
    %c0_i32 = arith.constant 0 : i32
    %c0_i32_0 = arith.constant 0 : i32
    return %c0_i32, %arg0 : i32, i32
  }
}

</mosaic_0001>

<llo_original>
// kernel: tpu_custom_call.1
$region0: #{tpu_custom_call.1}
  #allocation0 [shape = 'u32[]', space=smem, size = 0x4, offset = 0x4, fixed_abs, tag = 'smem constant byte address 0x4 - core index']
  #allocation1 [shape = 'u32[144,128]{1,0:T(1,128)}', space=vmem, size = 0x12000, scoped, tag = 'internal scratch']
  %s0 = inlined_call_operand.hbm [shape: f32[8,32], index: 0, kind: input, shape index: {}]
  %s1 = inlined_call_operand.vmem [shape: f32[10,32], index: 1, kind: input, shape index: {}]
  %s2 = inlined_call_operand.vmem [shape: f32[10,1], index: 2, kind: input, shape index: {}]
  %s3 = inlined_call_operand.vmem [shape: f32[10,10], index: 3, kind: input, shape index: {}]
  %s4 = inlined_call_operand.vmem [shape: f32[10,1], index: 4, kind: input, shape index: {}]
  %s5 = inlined_call_operand.vmem [shape: f32[2,10], index: 5, kind: input, shape index: {}]
  %s6 = inlined_call_operand.vmem [shape: f32[2,1], index: 6, kind: input, shape index: {}]
  %s7 = inlined_call_operand.hbm [shape: f32[2,8], index: 7, kind: output, shape index: {}]
  %s8 = sld [smem:[#allocation0]]
  $region42: #{tpu_custom_call.1} parent=0
    _
  %s10 = ssub.s32 1, %s8
  %s11 = scalar_select 0, %s10, %s8
  $region1: #{tpu_custom_call.1} parent=0
    #allocation2 [shape = 'u8[4096]{0}', space=vmem, size = 0x1000, scoped, tag = 'input window, operand 0, single buffered']
    #allocation3 [shape = 's32[1]{0}', space=sflag, size = 0x4, scoped, tag = 'scoped memory for tpu_custom_call.1']
    #allocation4 [shape = 's32[1]{0}', space=sflag, size = 0x4, scoped, tag = 'scoped memory for tpu_custom_call.1']
    #allocation5 [shape = 'u8[1024]{0}', space=vmem, size = 0x400, scoped, tag = 'output window, operand 0, single buffered']
    %12 = vsyncpa [#allocation3], 0
    %13 = vsyncpa [#allocation4], 0
    // Predicated region
    $region2: #{tpu_custom_call.1} parent=1 // pred_check
      _
    $region3: #{tpu_custom_call.1} parent=1 // pred_check_branch
      %15 = sbr.rel (0) target = $region5
    $region4: #{tpu_custom_call.1} parent=1 // pred_region
      %s17 = ssub.s32 128, 128
      %18 = vsyncadd [#allocation3], %s17
      %s20 = sshll.u32 [#allocation2], 4
      %s21 = int_to_ptr.vmem [resolvable:$true] %s20
      %23 = dma.hbm_to_vmem [thread:$0]  %s0, 128, %s21, [#allocation3]
    $region5: #{tpu_custom_call.1} parent=1 // pred_fallthru
      _
    // Predicated region
    $region6: #{tpu_custom_call.1} parent=1 // pred_check
      _
    $region7: #{tpu_custom_call.1} parent=1 // pred_check_branch
      %25 = sbr.rel (0) target = $region9
    $region8: #{tpu_custom_call.1} parent=1 // pred_region
      _
    $region9: #{tpu_custom_call.1} parent=1 // pred_fallthru
      _
    // Predicated region
    $region10: #{tpu_custom_call.1} parent=1 // pred_check
      _
    $region11: #{tpu_custom_call.1} parent=1 // pred_check_branch
      %27 = sbr.rel (0) target = $region13
    $region12: #{tpu_custom_call.1} parent=1 // pred_region
      _
    $region13: #{tpu_custom_call.1} parent=1 // pred_fallthru
      _
    // Predicated region
    $region14: #{tpu_custom_call.1} parent=1 // pred_check
      _
    $region15: #{tpu_custom_call.1} parent=1 // pred_check_branch
      %29 = sbr.rel (0) target = $region17
    $region16: #{tpu_custom_call.1} parent=1 // pred_region
      _
    $region17: #{tpu_custom_call.1} parent=1 // pred_fallthru
      _
    // Predicated region
    $region18: #{tpu_custom_call.1} parent=1 // pred_check
      _
    $region19: #{tpu_custom_call.1} parent=1 // pred_check_branch
      %31 = sbr.rel (0) target = $region21
    $region20: #{tpu_custom_call.1} parent=1 // pred_region
      _
    $region21: #{tpu_custom_call.1} parent=1 // pred_fallthru
      _
    // Predicated region
    $region22: #{tpu_custom_call.1} parent=1 // pred_check
      _
    $region23: #{tpu_custom_call.1} parent=1 // pred_check_branch
      %33 = sbr.rel (0) target = $region25
    $region24: #{tpu_custom_call.1} parent=1 // pred_region
      _
    $region25: #{tpu_custom_call.1} parent=1 // pred_fallthru
      _
    // Predicated region
    $region26: #{tpu_custom_call.1} parent=1 // pred_check
      _
    $region27: #{tpu_custom_call.1} parent=1 // pred_check_branch
      %35 = sbr.rel (0) target = $region29
    $region28: #{tpu_custom_call.1} parent=1 // pred_region
      _
    $region29: #{tpu_custom_call.1} parent=1 // pred_fallthru
      _
    // Predicated region
    $region30: #{tpu_custom_call.1} parent=1 // pred_check
      _
    $region31: #{tpu_custom_call.1} parent=1 // pred_check_branch
      %37 = sbr.rel (0) target = $region33
    $region32: #{tpu_custom_call.1} parent=1 // pred_region
      %38 = dma.done [#allocation3], 128
    $region33: #{tpu_custom_call.1} parent=1 // pred_fallthru
      _
    %v39 = vld [vmem:[#allocation2] sm:$0xff]
    %v40 = vld [vmem:[%s1] sm:$0xff]
    %v41 = vld [vmem:[%s1 + $0x8] sm:$0x3]
    %v42 = vld [vmem:[%s2] sm:$0xff]
    %v43 = vld [vmem:[%s2 + $0x8] sm:$0x3]
    %45 = vset.pattern.permute.xlu0 0
    %46 = vperm.xlu0 %45, %v42
    %v47 = vpop.permute.xlu0 %46
    %50 = vset.pattern.permute.xlu0 0
    %51 = vperm.xlu0 %50, %v43
    %v52 = vpop.permute.xlu0 %51
    %vm54 = vcmask 261120
    %v56 = vsel %vm54, %v40, 0
    %v59 = vsel %vm54, %v41, 0
    %v62 = vsel %vm54, %v39, 0
    %64 = vmatprep.subr.mxu0 0.0
    %65 = vmatpush1.xpose.msra.mxu0 0.0
    %66 = vmatprep.subr.mxu0 0.0
    %67 = vmatpush1.xpose.msra.mxu0 0.0
    %68 = vmatprep.subr.mxu0 0.0
    %69 = vmatpush1.xpose.msra.mxu0 0.0
    %70 = vmatprep.subr.mxu0 0.0
    %71 = vmatpush1.xpose.msra.mxu0 0.0
    %72 = vmatprep.subr.mxu0 0.0
    %73 = vmatpush1.xpose.msra.mxu0 0.0
    %74 = vmatprep.subr.mxu0 0.0
    %75 = vmatpush1.xpose.msra.mxu0 0.0
    %76 = vmatprep.subr.mxu0 0.0
    %77 = vmatpush1.xpose.msra.mxu0 0.0
    %78 = vmatprep.subr.mxu0 0.0
    %79 = vmatpush1.xpose.msra.mxu0 0.0
    %80 = vmatprep.subr.mxu0 0.0
    %81 = vmatpush1.xpose.msra.mxu0 0.0
    %82 = vmatprep.subr.mxu0 0.0
    %83 = vmatpush1.xpose.msra.mxu0 0.0
    %84 = vmatprep.subr.mxu0 0.0
    %85 = vmatpush1.xpose.msra.mxu0 0.0
    %86 = vmatprep.subr.mxu0 0.0
    %87 = vmatpush1.xpose.msra.mxu0 0.0
    %88 = vmatprep.subr.mxu0 0.0
    %89 = vmatpush1.xpose.msra.mxu0 0.0
    %90 = vmatprep.subr.mxu0 0.0
    %91 = vmatpush1.xpose.msra.mxu0 0.0
    %92 = vmatprep.subr.mxu0 0.0
    %93 = vmatpush1.xpose.msra.mxu0 0.0
    %94 = vmatprep.subr.mxu0 0.0
    %95 = vmatpush1.xpose.msra.mxu0 %v62
    %96 = vmatprep.subr.mxu0 0.0
    %97 = vmatpush2.xpose.msra.mxu0 0.0
    %98 = vmatprep.subr.mxu0 0.0
    %99 = vmatpush2.xpose.msra.mxu0 0.0
    %100 = vmatprep.subr.mxu0 0.0
    %101 = vmatpush2.xpose.msra.mxu0 0.0
    %102 = vmatprep.subr.mxu0 0.0
    %103 = vmatpush2.xpose.msra.mxu0 0.0
    %104 = vmatprep.subr.mxu0 0.0
    %105 = vmatpush2.xpose.msra.mxu0 0.0
    %106 = vmatprep.subr.mxu0 0.0
    %107 = vmatpush2.xpose.msra.mxu0 0.0
    %108 = vmatprep.subr.mxu0 0.0
    %109 = vmatpush2.xpose.msra.mxu0 0.0
    %110 = vmatprep.subr.mxu0 0.0
    %111 = vmatpush2.xpose.msra.mxu0 0.0
    %112 = vmatprep.subr.mxu0 0.0
    %113 = vmatpush2.xpose.msra.mxu0 0.0
    %114 = vmatprep.subr.mxu0 0.0
    %115 = vmatpush2.xpose.msra.mxu0 0.0
    %116 = vmatprep.subr.mxu0 0.0
    %117 = vmatpush2.xpose.msra.mxu0 0.0
    %118 = vmatprep.subr.mxu0 0.0
    %119 = vmatpush2.xpose.msra.mxu0 0.0
    %120 = vmatprep.subr.mxu0 0.0
    %121 = vmatpush2.xpose.msra.mxu0 0.0
    %122 = vmatprep.subr.mxu0 0.0
    %123 = vmatpush2.xpose.msra.mxu0 0.0
    %124 = vmatprep.subr.mxu0 0.0
    %125 = vmatpush2.xpose.msra.mxu0 0.0
    %126 = vmatprep.subr.mxu0 0.0
    %127 = vmatpush2.xpose.msra.mxu0 0.0
    %128 = vmatprep.mubr.f32.mxu0 0.0
    %129 = vmatmul.mubr.f32.gmra.mxu0 %v56
    %v130 = vpop.f32.mrf.mxu0
    %v131 = vadd.f32 %v47, %v130
    %v132 = vpop.f32.mrf.mxu0
    %133 = vmatprep.mubr.f32.mxu0 0.0
    %134 = vmatmul.mubr.f32.gmra.mxu0 %v59
    %v135 = vpop.f32.mrf.mxu0
    %v136 = vadd.f32 %v52, %v135
    %v137 = vpop.f32.mrf.mxu0
    %138 = vdwg.mxu0
    %v139 = vmul.f32 %v131, 0.01
    %v140 = vmul.f32 %v136, 0.01
    %v141 = vmax.f32 %v131, %v139
    %v142 = vmax.f32 %v136, %v140
    %v143 = vld [vmem:[%s3] sm:$0xff]
    %v144 = vld [vmem:[%s3 + $0x8] sm:$0x3]
    %v145 = vld [vmem:[%s4] sm:$0xff]
    %v146 = vld [vmem:[%s4 + $0x8] sm:$0x3]
    %148 = vset.pattern.permute.xlu0 0
    %149 = vperm.xlu0 %148, %v145
    %v150 = vpop.permute.xlu0 %149
    %153 = vset.pattern.permute.xlu0 0
    %154 = vperm.xlu0 %153, %v146
    %v155 = vpop.permute.xlu0 %154
    %vm157 = vcmask 80896
    %v159 = vsel %vm157, %v143, 0
    %v162 = vsel %vm157, %v144, 0
    %vm164 = vcmask 1041408
    %v166 = vsel %vm164, %v142, 0
    %168 = vmatprep.subr.mxu0 0.0
    %169 = vmatpush1.msra.mxu0 0.0
    %170 = vmatprep.subr.mxu0 0.0
    %171 = vmatpush1.msra.mxu0 0.0
    %172 = vmatprep.subr.mxu0 0.0
    %173 = vmatpush1.msra.mxu0 0.0
    %174 = vmatprep.subr.mxu0 0.0
    %175 = vmatpush1.msra.mxu0 0.0
    %176 = vmatprep.subr.mxu0 0.0
    %177 = vmatpush1.msra.mxu0 0.0
    %178 = vmatprep.subr.mxu0 0.0
    %179 = vmatpush1.msra.mxu0 0.0
    %180 = vmatprep.subr.mxu0 0.0
    %181 = vmatpush1.msra.mxu0 0.0
    %182 = vmatprep.subr.mxu0 0.0
    %183 = vmatpush1.msra.mxu0 0.0
    %184 = vmatprep.subr.mxu0 0.0
    %185 = vmatpush1.msra.mxu0 0.0
    %186 = vmatprep.subr.mxu0 0.0
    %187 = vmatpush1.msra.mxu0 0.0
    %188 = vmatprep.subr.mxu0 0.0
    %189 = vmatpush1.msra.mxu0 0.0
    %190 = vmatprep.subr.mxu0 0.0
    %191 = vmatpush1.msra.mxu0 0.0
    %192 = vmatprep.subr.mxu0 0.0
    %193 = vmatpush1.msra.mxu0 0.0
    %194 = vmatprep.subr.mxu0 0.0
    %195 = vmatpush1.msra.mxu0 0.0
    %196 = vmatprep.subr.mxu0 0.0
    %197 = vmatpush1.msra.mxu0 %v166
    %198 = vmatprep.subr.mxu0 0.0
    %199 = vmatpush1.msra.mxu0 %v141
    %200 = vmatprep.subr.mxu0 0.0
    %201 = vmatpush2.msra.mxu0 0.0
    %202 = vmatprep.subr.mxu0 0.0
    %203 = vmatpush2.msra.mxu0 0.0
    %204 = vmatprep.subr.mxu0 0.0
    %205 = vmatpush2.msra.mxu0 0.0
    %206 = vmatprep.subr.mxu0 0.0
    %207 = vmatpush2.msra.mxu0 0.0
    %208 = vmatprep.subr.mxu0 0.0
    %209 = vmatpush2.msra.mxu0 0.0
    %210 = vmatprep.subr.mxu0 0.0
    %211 = vmatpush2.msra.mxu0 0.0
    %212 = vmatprep.subr.mxu0 0.0
    %213 = vmatpush2.msra.mxu0 0.0
    %214 = vmatprep.subr.mxu0 0.0
    %215 = vmatpush2.msra.mxu0 0.0
    %216 = vmatprep.subr.mxu0 0.0
    %217 = vmatpush2.msra.mxu0 0.0
    %218 = vmatprep.subr.mxu0 0.0
    %219 = vmatpush2.msra.mxu0 0.0
    %220 = vmatprep.subr.mxu0 0.0
    %221 = vmatpush2.msra.mxu0 0.0
    %222 = vmatprep.subr.mxu0 0.0
    %223 = vmatpush2.msra.mxu0 0.0
    %224 = vmatprep.subr.mxu0 0.0
    %225 = vmatpush2.msra.mxu0 0.0
    %226 = vmatprep.subr.mxu0 0.0
    %227 = vmatpush2.msra.mxu0 0.0
    %228 = vmatprep.subr.mxu0 0.0
    %229 = vmatpush2.msra.mxu0 0.0
    %230 = vmatprep.subr.mxu0 0.0
    %231 = vmatpush2.msra.mxu0 0.0
    %232 = vmatprep.mubr.f32.mxu0 0.0
    %233 = vmatmul.mubr.f32.gmra.mxu0 %v159
    %v234 = vpop.f32.mrf.mxu0
    %v235 = vadd.f32 %v150, %v234
    %v236 = vpop.f32.mrf.mxu0
    %237 = vmatprep.mubr.f32.mxu0 0.0
    %238 = vmatmul.mubr.f32.gmra.mxu0 %v162
    %v239 = vpop.f32.mrf.mxu0
    %v240 = vadd.f32 %v155, %v239
    %v241 = vpop.f32.mrf.mxu0
    %242 = vdwg.mxu0
    %v243 = vmul.f32 %v235, 0.01
    %v244 = vmul.f32 %v240, 0.01
    %v245 = vmax.f32 %v235, %v243
    %v246 = vmax.f32 %v240, %v244
    %v247 = vld [vmem:[%s5] sm:$0x3]
    %v248 = vld [vmem:[%s6] sm:$0x3]
    %250 = vset.pattern.permute.xlu0 0
    %251 = vperm.xlu0 %250, %v248
    %v252 = vpop.permute.xlu0 %251
    %v255 = vsel %vm157, %v247, 0
    %v258 = vsel %vm164, %v246, 0
    %260 = vmatprep.subr.mxu0 0.0
    %261 = vmatpush1.msra.mxu0 0.0
    %262 = vmatprep.subr.mxu0 0.0
    %263 = vmatpush1.msra.mxu0 0.0
    %264 = vmatprep.subr.mxu0 0.0
    %265 = vmatpush1.msra.mxu0 0.0
    %266 = vmatprep.subr.mxu0 0.0
    %267 = vmatpush1.msra.mxu0 0.0
    %268 = vmatprep.subr.mxu0 0.0
    %269 = vmatpush1.msra.mxu0 0.0
    %270 = vmatprep.subr.mxu0 0.0
    %271 = vmatpush1.msra.mxu0 0.0
    %272 = vmatprep.subr.mxu0 0.0
    %273 = vmatpush1.msra.mxu0 0.0
    %274 = vmatprep.subr.mxu0 0.0
    %275 = vmatpush1.msra.mxu0 0.0
    %276 = vmatprep.subr.mxu0 0.0
    %277 = vmatpush1.msra.mxu0 0.0
    %278 = vmatprep.subr.mxu0 0.0
    %279 = vmatpush1.msra.mxu0 0.0
    %280 = vmatprep.subr.mxu0 0.0
    %281 = vmatpush1.msra.mxu0 0.0
    %282 = vmatprep.subr.mxu0 0.0
    %283 = vmatpush1.msra.mxu0 0.0
    %284 = vmatprep.subr.mxu0 0.0
    %285 = vmatpush1.msra.mxu0 0.0
    %286 = vmatprep.subr.mxu0 0.0
    %287 = vmatpush1.msra.mxu0 0.0
    %288 = vmatprep.subr.mxu0 0.0
    %289 = vmatpush1.msra.mxu0 %v258
    %290 = vmatprep.subr.mxu0 0.0
    %291 = vmatpush1.msra.mxu0 %v245
    %292 = vmatprep.subr.mxu0 0.0
    %293 = vmatpush2.msra.mxu0 0.0
    %294 = vmatprep.subr.mxu0 0.0
    %295 = vmatpush2.msra.mxu0 0.0
    %296 = vmatprep.subr.mxu0 0.0
    %297 = vmatpush2.msra.mxu0 0.0
    %298 = vmatprep.subr.mxu0 0.0
    %299 = vmatpush2.msra.mxu0 0.0
    %300 = vmatprep.subr.mxu0 0.0
    %301 = vmatpush2.msra.mxu0 0.0
    %302 = vmatprep.subr.mxu0 0.0
    %303 = vmatpush2.msra.mxu0 0.0
    %304 = vmatprep.subr.mxu0 0.0
    %305 = vmatpush2.msra.mxu0 0.0
    %306 = vmatprep.subr.mxu0 0.0
    %307 = vmatpush2.msra.mxu0 0.0
    %308 = vmatprep.subr.mxu0 0.0
    %309 = vmatpush2.msra.mxu0 0.0
    %310 = vmatprep.subr.mxu0 0.0
    %311 = vmatpush2.msra.mxu0 0.0
    %312 = vmatprep.subr.mxu0 0.0
    %313 = vmatpush2.msra.mxu0 0.0
    %314 = vmatprep.subr.mxu0 0.0
    %315 = vmatpush2.msra.mxu0 0.0
    %316 = vmatprep.subr.mxu0 0.0
    %317 = vmatpush2.msra.mxu0 0.0
    %318 = vmatprep.subr.mxu0 0.0
    %319 = vmatpush2.msra.mxu0 0.0
    %320 = vmatprep.subr.mxu0 0.0
    %321 = vmatpush2.msra.mxu0 0.0
    %322 = vmatprep.subr.mxu0 0.0
    %323 = vmatpush2.msra.mxu0 0.0
    %324 = vmatprep.mubr.f32.mxu0 0.0
    %325 = vmatmul.mubr.f32.gmra.mxu0 %v255
    %v326 = vpop.f32.mrf.mxu0
    %v327 = vadd.f32 %v252, %v326
    %v328 = vpop.f32.mrf.mxu0
    %329 = vdwg.mxu0
    %vm330 = vcmask 58368
    %331 = vst.msk [vmem:[#allocation5] sm:$0x3] %vm330, %v327
    // Predicated region
    $region34: #{tpu_custom_call.1} parent=1 // pred_check
      _
    $region35: #{tpu_custom_call.1} parent=1 // pred_check_branch
      %333 = sbr.rel (0) target = $region37
    $region36: #{tpu_custom_call.1} parent=1 // pred_region
      %s335 = ssub.s32 32, 32
      %336 = vsyncadd [#allocation4], %s335
      %s338 = sshll.u32 [#allocation5], 4
      %s339 = int_to_ptr.vmem [resolvable:$true] %s338
      %341 = dma.vmem_to_hbm [thread:$0]  %s339, 32, %s7, [#allocation4]
    $region37: #{tpu_custom_call.1} parent=1 // pred_fallthru
      _
    // Predicated region
    $region38: #{tpu_custom_call.1} parent=1 // pred_check
      _
    $region39: #{tpu_custom_call.1} parent=1 // pred_check_branch
      %343 = sbr.rel (0) target = $region41
    $region40: #{tpu_custom_call.1} parent=1 // pred_region
      %344 = dma.done [#allocation4], 32
    $region41: #{tpu_custom_call.1} parent=1 // pred_fallthru
      _
    %345 = vsyncpa [#allocation3], 1
    %346 = vsyncpa [#allocation4], 1

</llo_original>
